<compile_context>
chip_gen: v7x
topology: tpu7x:2x2x1
jax: 0.10.0
libtpu: 0.0.40
codegen_flags: <defaults>
</compile_context>

<pallas_src>
import functools

import jax
import jax.numpy as jnp
from jax.experimental import pallas as pl
from jax.experimental.pallas import tpu as pltpu


def _wma_kernel(x_ref, w_ref, b_ref, o_ref, *, cast_bf16):
    """Per-grid-step kernel.

    x_ref: (Bt, T, F)   input block (Bt batch rows, full padded time, features)
    w_ref: (W, F, F)    conv weights, (tap, in_feature, out_feature), resident
    b_ref: (1, F)       conv bias, resident
    o_ref: (Bt, T, F)   output block
    """
    Bt, T, F = x_ref.shape
    W = w_ref.shape[0]

    x = x_ref[...]                      # (Bt, T, F), original dtype
    # Fold batch into the sublane (row) axis: one dense (Bt*T, F) slab.
    # T is padded to a multiple of 8 in the wrapper, so this is layout-free.
    x_flat = x.reshape(Bt * T, F)

    acc = jnp.zeros((Bt * T, F), jnp.float32)
    for k in range(W):                  # W is small and static
        # Shift tap k toward higher rows so that row t holds x[t - (W-1-k)];
        # for rows t >= W-1 the accumulated sum is exactly the "valid" conv
        # output already placed at its final time offset.  Rows t < W-1 wrap
        # around (possibly across batch rows), but they are replaced by the
        # raw prefix in the blended store below, so their value never matters.
        s = W - 1 - k
        xs = x_flat if s == 0 else pltpu.roll(x_flat, shift=s, axis=0)
        wk = w_ref[k]
        if cast_bf16:
            xs = xs.astype(jnp.bfloat16)
            wk = wk.astype(jnp.bfloat16)
        acc = acc + jnp.dot(xs, wk, preferred_element_type=jnp.float32)

    acc = acc + b_ref[...].astype(jnp.float32)   # bias added once, hoisted

    conv = acc.reshape(Bt, T, F).astype(o_ref.dtype)
    # Single blended store: rows t < W-1 of every batch row keep the raw input
    # (matching torch.concat([X[:, :, :W-1], conv(X)], dim=-1)); one full-tile
    # aligned vst, no second masked store.
    t_idx = jax.lax.broadcasted_iota(jnp.int32, (Bt, T, F), 1)
    o_ref[...] = jnp.where(t_idx < (W - 1), x, conv)


def _vmem_capacity_bytes():
    """Per-core VMEM capacity; conservative fallback if the query is unavailable."""
    try:
        cap = int(pltpu.get_tpu_info().vmem_capacity_bytes)
        if cap > 0:
            return cap
    except Exception:
        pass
    return 64 * 1024 * 1024   # v7x per-TensorCore size (the smallest generation)


def _per_row_bytes(T, F, x_itemsize):
    # Per batch row, per grid step:
    #   double-buffered input + output DMA tiles:          4 * T*F*itemsize
    #   live in-kernel values (x slab, one rolled tap copy,
    #   blend temporary):                                   3 * T*F*itemsize
    #   f32 accumulator (+ one add temporary):              8 * T*F
    return T * F * (7 * x_itemsize + 8)


def _choose_batch_block(B, T, F, W, x_itemsize, w_itemsize, budget_bytes):
    """Largest batch block whose full VMEM footprint fits the budget."""
    resident = 2 * (W * F * F + F) * w_itemsize     # dbl-buffered weight + bias
    per_row = _per_row_bytes(T, F, x_itemsize)
    avail = max(budget_bytes - resident, per_row)
    return int(max(1, min(B, avail // per_row)))


def weighted_moving_average(x, weight, bias, *, batch_block=None):
    """x: (B, T, F) or (T, F); weight: (W, F_in, F_out); bias: (F_out,).

    Matches the PyTorch module: 2-D inputs are promoted to batch 1 and the
    result stays 3-D (the module never squeezes back).
    """
    if x.ndim == 2:
        x = x[None, ...]
    B, T, F = x.shape
    W = weight.shape[0]
    if T < W:
        raise ValueError(f"sequence length T={T} must be >= win_length W={W}")

    x_itemsize = x.dtype.itemsize
    w_itemsize = weight.dtype.itemsize

    # Pad T to a sublane multiple so the in-kernel flatten/unflatten is free.
    T_pad = int(pl.cdiv(T, 8) * 8)
    x_t = x if T_pad == T else jnp.pad(x, ((0, 0), (0, T_pad - T), (0, 0)))

    # Generation-aware VMEM budget (half of capacity, leaving headroom for
    # Mosaic internals / spill slack).
    cap = _vmem_capacity_bytes()
    budget = cap // 2

    Bt = batch_block if batch_block is not None else _choose_batch_block(
        B, T_pad, F, W, x_itemsize, w_itemsize, budget)
    # Keep at least 2 grid steps whenever possible: lets ("parallel",) shard the
    # batch axis across v7x's two TensorCores and keeps the DMA pipeline busy.
    if B >= 2:
        Bt = min(Bt, max(1, B // 2))
    Bt = int(max(1, min(Bt, B)))
    B_pad = int(pl.cdiv(B, Bt) * Bt)
    x_in = x_t if B_pad == B else jnp.pad(x_t, ((0, B_pad - B), (0, 0), (0, 0)))

    bias2d = bias.reshape(1, F)

    # Cast matmul operands to bf16 (f32 accumulation) only when the matmul is
    # large enough to be MXU-bound -- matters most on v5e.
    cast_bf16 = bool(x.dtype == jnp.float32 and F >= 128)

    resident = 2 * (W * F * F + F) * w_itemsize
    footprint = resident + Bt * _per_row_bytes(T_pad, F, x_itemsize)
    vmem_limit = int(min(cap, max(32 * 1024 * 1024, footprint + (4 << 20))))

    cost = pl.CostEstimate(
        flops=2 * B_pad * T_pad * W * F * F,
        transcendentals=0,
        bytes_accessed=(2 * B_pad * T_pad * F * x_itemsize
                        + (W * F * F + F) * w_itemsize),
    )

    kernel = functools.partial(_wma_kernel, cast_bf16=cast_bf16)

    out = pl.pallas_call(
        kernel,
        out_shape=jax.ShapeDtypeStruct((B_pad, T_pad, F), x.dtype),
        grid=(B_pad // Bt,),
        in_specs=[
            pl.BlockSpec((Bt, T_pad, F), lambda b: (b, 0, 0)),
            # Constant index_maps -> weight/bias blocks stay resident across
            # grid steps (no per-step re-DMA).
            pl.BlockSpec((W, F, F), lambda b: (0, 0, 0)),
            pl.BlockSpec((1, F), lambda b: (0, 0)),
        ],
        out_specs=pl.BlockSpec((Bt, T_pad, F), lambda b: (b, 0, 0)),
        compiler_params=pltpu.CompilerParams(
            dimension_semantics=("parallel",),
            vmem_limit_bytes=vmem_limit,
        ),
        cost_estimate=cost,
    )(x_in, weight, bias2d)

    if B_pad != B or T_pad != T:
        out = out[:B, :T, :]
    return out


def _reference(x, weight, bias):
    """Pure-JAX reference mirroring the PyTorch forward."""
    B, T, F = x.shape
    W = weight.shape[0]
    T_out = T - W + 1
    conv = jnp.zeros((B, T_out, F), jnp.float32)
    for k in range(W):
        conv = conv + jnp.einsum("btf,fo->bto", x[:, k:k + T_out, :], weight[k])
    conv = conv + bias[None, None, :]
    return jnp.concatenate([x[:, : W - 1, :], conv.astype(x.dtype)], axis=1)


if __name__ == "__main__":
    # Small shapes consistent with the module: batch=2, seq=16, num_features=4,
    # win_length=3.
    B, T, F, W = 2, 16, 4, 3

    key = jax.random.PRNGKey(0)
    kx, kw, kb = jax.random.split(key, 3)

    x = jax.random.normal(kx, (B, T, F), dtype=jnp.float32)

    # Deterministic Conv1d-style init (uniform in +/- 1/sqrt(fan_in)),
    # stored directly in (W, F_in, F_out) layout.
    fan_in = F * W
    bound = 1.0 / jnp.sqrt(jnp.float32(fan_in))
    weight = jax.random.uniform(kw, (W, F, F), jnp.float32, -bound, bound)
    bias = jax.random.uniform(kb, (F,), jnp.float32, -bound, bound)

    out = weighted_moving_average(x, weight, bias)
    out = jax.block_until_ready(out)

    ref = _reference(x, weight, bias)
    assert out.shape == (B, T, F)
    assert jnp.allclose(out, ref, atol=1e-5, rtol=1e-5), float(
        jnp.max(jnp.abs(out - ref)))

    print("KERNEL_OK")
</pallas_src>

<mosaic_0001>
module attributes {stable_mosaic.version = 11 : i64} {
  func.func @_wma_kernel(%arg0: i32, %arg1: memref<1x16x4xf32, #tpu.memory_space<vmem>>, %arg2: memref<3x4x4xf32, #tpu.memory_space<vmem>>, %arg3: memref<1x4xf32, #tpu.memory_space<vmem>>, %arg4: memref<1x16x4xf32, #tpu.memory_space<vmem>>) attributes {dimension_semantics = [#tpu.dimension_semantics<parallel>], iteration_bounds = array<i64: 2>, scalar_prefetch = 0 : i64, scratch_operands = 0 : i64, tpu.core_type = #tpu.core_type<tc>, window_params = [{transform_indices = @transform_0, window_bounds = array<i64: 1, 16, 4>}, {pipeline_mode = #tpu.pipeline_mode<synchronous>, transform_indices = @transform_1, window_bounds = array<i64: 3, 4, 4>}, {pipeline_mode = #tpu.pipeline_mode<synchronous>, transform_indices = @transform_2, window_bounds = array<i64: 1, 4>}, {transform_indices = @transform_3, window_bounds = array<i64: 1, 16, 4>}]} {
    %c0 = arith.constant 0 : index
    %c0_0 = arith.constant 0 : index
    %c0_1 = arith.constant 0 : index
    %0 = vector.load %arg1[%c0, %c0_0, %c0_1] : memref<1x16x4xf32, #tpu.memory_space<vmem>>, vector<1x16x4xf32>
    %1 = vector.shape_cast %0 : vector<1x16x4xf32> to vector<16x4xf32>
    %cst = arith.constant 0.000000e+00 : f32
    %2 = vector.broadcast %cst : f32 to vector<16x4xf32>
    %c2_i32 = arith.constant 2 : i32
    %3 = tpu.dynamic_rotate %1 by %c2_i32 dim 0 : vector<16x4xf32>, i32 -> vector<16x4xf32>
    %c0_2 = arith.constant 0 : index
    %c0_3 = arith.constant 0 : index
    %c0_4 = arith.constant 0 : index
    %4 = vector.load %arg2[%c0_2, %c0_3, %c0_4] : memref<3x4x4xf32, #tpu.memory_space<vmem>>, vector<1x4x4xf32>
    %5 = vector.shape_cast %4 : vector<1x4x4xf32> to vector<4x4xf32>
    %cst_5 = arith.constant dense<0.000000e+00> : vector<16x4xf32>
    %6 = tpu.matmul %3, %5, %cst_5 {dimension_numbers = #tpu.dot_dimension_numbers<[1], [0], [0], [1], [0, 0, 1, 1], [], []>} : vector<16x4xf32>, vector<4x4xf32>, vector<16x4xf32> -> vector<16x4xf32>
    %7 = arith.addf %2, %6 : vector<16x4xf32>
    %c1_i32 = arith.constant 1 : i32
    %8 = tpu.dynamic_rotate %1 by %c1_i32 dim 0 : vector<16x4xf32>, i32 -> vector<16x4xf32>
    %c1 = arith.constant 1 : index
    %c0_6 = arith.constant 0 : index
    %c0_7 = arith.constant 0 : index
    %9 = vector.load %arg2[%c1, %c0_6, %c0_7] : memref<3x4x4xf32, #tpu.memory_space<vmem>>, vector<1x4x4xf32>
    %10 = vector.shape_cast %9 : vector<1x4x4xf32> to vector<4x4xf32>
    %cst_8 = arith.constant dense<0.000000e+00> : vector<16x4xf32>
    %11 = tpu.matmul %8, %10, %cst_8 {dimension_numbers = #tpu.dot_dimension_numbers<[1], [0], [0], [1], [0, 0, 1, 1], [], []>} : vector<16x4xf32>, vector<4x4xf32>, vector<16x4xf32> -> vector<16x4xf32>
    %12 = arith.addf %7, %11 : vector<16x4xf32>
    %c2 = arith.constant 2 : index
    %c0_9 = arith.constant 0 : index
    %c0_10 = arith.constant 0 : index
    %13 = vector.load %arg2[%c2, %c0_9, %c0_10] : memref<3x4x4xf32, #tpu.memory_space<vmem>>, vector<1x4x4xf32>
    %14 = vector.shape_cast %13 : vector<1x4x4xf32> to vector<4x4xf32>
    %cst_11 = arith.constant dense<0.000000e+00> : vector<16x4xf32>
    %15 = tpu.matmul %1, %14, %cst_11 {dimension_numbers = #tpu.dot_dimension_numbers<[1], [0], [0], [1], [0, 0, 1, 1], [], []>} : vector<16x4xf32>, vector<4x4xf32>, vector<16x4xf32> -> vector<16x4xf32>
    %16 = arith.addf %12, %15 : vector<16x4xf32>
    %c0_12 = arith.constant 0 : index
    %c0_13 = arith.constant 0 : index
    %17 = vector.load %arg3[%c0_12, %c0_13] : memref<1x4xf32, #tpu.memory_space<vmem>>, vector<1x4xf32>
    %18 = vector.broadcast %17 : vector<1x4xf32> to vector<16x4xf32>
    %19 = arith.addf %16, %18 : vector<16x4xf32>
    %20 = vector.shape_cast %19 : vector<16x4xf32> to vector<1x16x4xf32>
    %21 = tpu.iota {dimensions = array<i32: 1>} : vector<1x16x4xi32>
    %c2_i32_14 = arith.constant 2 : i32
    %22 = vector.broadcast %c2_i32_14 : i32 to vector<1x16x4xi32>
    %23 = arith.cmpi slt, %21, %22 : vector<1x16x4xi32>
    %24 = arith.select %23, %0, %20 : vector<1x16x4xi1>, vector<1x16x4xf32>
    %c0_15 = arith.constant 0 : index
    %c0_16 = arith.constant 0 : index
    %c0_17 = arith.constant 0 : index
    %25 = vector.load %arg4[%c0_15, %c0_16, %c0_17] : memref<1x16x4xf32, #tpu.memory_space<vmem>>, vector<1x16x4xf32>
    tpu.vector_store %arg4[%c0_15, %c0_16, %c0_17], %24 {strides = array<i32>} : memref<1x16x4xf32, #tpu.memory_space<vmem>>, vector<1x16x4xf32>,
    return
  }
  func.func @transform_0(%arg0: i32) -> (i32, i32, i32) {
    %c0_i32 = arith.constant 0 : i32
    %c0_i32_0 = arith.constant 0 : i32
    %c0_i32_1 = arith.constant 0 : i32
    return %arg0, %c0_i32, %c0_i32_0 : i32, i32, i32
  }
  func.func @transform_1(%arg0: i32) -> (i32, i32, i32) {
    %c0_i32 = arith.constant 0 : i32
    %c0_i32_0 = arith.constant 0 : i32
    %c0_i32_1 = arith.constant 0 : i32
    %c0_i32_2 = arith.constant 0 : i32
    return %c0_i32, %c0_i32_0, %c0_i32_1 : i32, i32, i32
  }
  func.func @transform_2(%arg0: i32) -> (i32, i32) {
    %c0_i32 = arith.constant 0 : i32
    %c0_i32_0 = arith.constant 0 : i32
    %c0_i32_1 = arith.constant 0 : i32
    return %c0_i32, %c0_i32_0 : i32, i32
  }
  func.func @transform_3(%arg0: i32) -> (i32, i32, i32) {
    %c0_i32 = arith.constant 0 : i32
    %c0_i32_0 = arith.constant 0 : i32
    %c0_i32_1 = arith.constant 0 : i32
    return %arg0, %c0_i32, %c0_i32_0 : i32, i32, i32
  }
}

</mosaic_0001>

<llo_original>
// kernel: tpu_custom_call.1
$region0: #{tpu_custom_call.1}
  #allocation0 [shape = 'u32[]', space=smem, size = 0x4, offset = 0x4, fixed_abs, tag = 'smem constant byte address 0x4 - core index']
  #allocation1 [shape = 'u32[144,128]{1,0:T(1,128)}', space=vmem, size = 0x12000, scoped, tag = 'internal scratch']
  %s0 = inlined_call_operand.vmem [shape: f32[2,16,4], index: 0, kind: input, shape index: {}]
  %s1 = inlined_call_operand.vmem [shape: f32[3,4,4], index: 1, kind: input, shape index: {}]
  %s2 = inlined_call_operand.vmem [shape: f32[1,4], index: 2, kind: input, shape index: {}]
  %s3 = inlined_call_operand.vmem [shape: f32[2,16,4], index: 3, kind: output, shape index: {}]
  %s4 = sld [smem:[#allocation0]]
  $region45: #{tpu_custom_call.1} parent=0
    _
  %s6 = ssub.s32 1, %s4
  %s7 = scalar_select 0, %s6, %s4
  loop: start=0, step=1, limit=4
  $region2: #{tpu_custom_call.1} parent=0 // loop_pre_header
    _
  $region3: #{tpu_custom_call.1} parent=0 // loop_header
    %s9 = sphi 0, %s13
    %p10 = scmp.ge.s32.totalorder %s9, 4
    %s19 = sphi 0, %s21
    %s22 = sphi 0, %s19
    %s23 = sphi 0, %s22
    %s39 = sphi 0, %s23
    %s43 = sphi 0, %s43
    %s45 = sphi 0, %s43
    %s46 = sphi 0, %s45
    %s60 = sphi 0, %s46
    %s64 = sphi 0, %s64
    %s66 = sphi 0, %s64
    %s67 = sphi 0, %s66
    %s81 = sphi 0, %s67
    %s87 = sphi 0, %s89
    %s90 = sphi 0, %s87
    %s91 = sphi 0, %s90
    %s107 = sphi 0, %s91
  $region4: #{tpu_custom_call.1} parent=0 // loop_header_branch
    %12 = sbr.rel (%p10) target = $region8
  $region5: #{tpu_custom_call.1} parent=0 // loop_body
    %s14 = ssub.s32 %s9, 1
    %s15 = ssub.s32 %s9, 2
    %s16 = sadd.s32 %s9, 1
    %s17 = ssub.s32 %s9, %s16
    %p18 = scmp.eq.s32.totalorder %s17, 0
    %s20 = sadd.s32 %s19, 1
    %s21 = scalar_select %p18, %s19, %s20
    %p24 = pneg %p18
    %p25 = scmp.eq.s32.totalorder %s9, 1
    %p26 = por %p24, %p25
    %p27 = scmp.ne.s32.totalorder %s19, %s22
    %p28 = scmp.eq.s32.totalorder %s9, 0
    %p29 = por %p27, %p28
    %p30 = scmp.ne.s32.totalorder %s19, %s22
    %p31 = scmp.eq.s32.totalorder %s14, 1
    %p32 = por %p30, %p31
    %p33 = scmp.ne.s32.totalorder %s22, %s23
    %p34 = scmp.eq.s32.totalorder %s14, 0
    %p35 = por %p33, %p34
    %p36 = scmp.ne.s32.totalorder %s22, %s23
    %p37 = scmp.eq.s32.totalorder %s15, 1
    %p38 = por %p36, %p37
    %p40 = scmp.ne.s32.totalorder %s23, %s39
    %p41 = scmp.eq.s32.totalorder %s15, 0
    %p42 = por %p40, %p41
    %s44 = sadd.s32 %s43, 1
    %p47 = scmp.eq.s32.totalorder %s9, 1
    %p48 = scmp.ne.s32.totalorder %s43, %s45
    %p49 = scmp.eq.s32.totalorder %s9, 0
    %p50 = por %p48, %p49
    %p51 = scmp.ne.s32.totalorder %s43, %s45
    %p52 = scmp.eq.s32.totalorder %s14, 1
    %p53 = por %p51, %p52
    %p54 = scmp.ne.s32.totalorder %s45, %s46
    %p55 = scmp.eq.s32.totalorder %s14, 0
    %p56 = por %p54, %p55
    %p57 = scmp.ne.s32.totalorder %s45, %s46
    %p58 = scmp.eq.s32.totalorder %s15, 1
    %p59 = por %p57, %p58
    %p61 = scmp.ne.s32.totalorder %s46, %s60
    %p62 = scmp.eq.s32.totalorder %s15, 0
    %p63 = por %p61, %p62
    %s65 = sadd.s32 %s64, 1
    %p68 = scmp.eq.s32.totalorder %s9, 1
    %p69 = scmp.ne.s32.totalorder %s64, %s66
    %p70 = scmp.eq.s32.totalorder %s9, 0
    %p71 = por %p69, %p70
    %p72 = scmp.ne.s32.totalorder %s64, %s66
    %p73 = scmp.eq.s32.totalorder %s14, 1
    %p74 = por %p72, %p73
    %p75 = scmp.ne.s32.totalorder %s66, %s67
    %p76 = scmp.eq.s32.totalorder %s14, 0
    %p77 = por %p75, %p76
    %p78 = scmp.ne.s32.totalorder %s66, %s67
    %p79 = scmp.eq.s32.totalorder %s15, 1
    %p80 = por %p78, %p79
    %p82 = scmp.ne.s32.totalorder %s67, %s81
    %p83 = scmp.eq.s32.totalorder %s15, 0
    %p84 = por %p82, %p83
    %s85 = ssub.s32 %s9, %s16
    %p86 = scmp.eq.s32.totalorder %s85, 0
    %s88 = sadd.s32 %s87, 1
    %s89 = scalar_select %p86, %s87, %s88
    %p92 = pneg %p86
    %p93 = scmp.eq.s32.totalorder %s9, 1
    %p94 = por %p92, %p93
    %p95 = scmp.ne.s32.totalorder %s87, %s90
    %p96 = scmp.eq.s32.totalorder %s9, 0
    %p97 = por %p95, %p96
    %p98 = scmp.ne.s32.totalorder %s87, %s90
    %p99 = scmp.eq.s32.totalorder %s14, 1
    %p100 = por %p98, %p99
    %p101 = scmp.ne.s32.totalorder %s90, %s91
    %p102 = scmp.eq.s32.totalorder %s14, 0
    %p103 = por %p101, %p102
    %p104 = scmp.ne.s32.totalorder %s90, %s91
    %p105 = scmp.eq.s32.totalorder %s15, 1
    %p106 = por %p104, %p105
    %p108 = scmp.ne.s32.totalorder %s91, %s107
    %p109 = scmp.eq.s32.totalorder %s15, 0
    %p110 = por %p108, %p109
    %p111 = scmp.le.s32.totalorder 1, %s9
    %p112 = scmp.lt.s32.totalorder %s9, 3
    %p113 = pnand %p111, %p112
    %p114 = pneg %p113
    // Predicated region
    $region9: #{tpu_custom_call.1} parent=5 // pred_check
      _
    $region10: #{tpu_custom_call.1} parent=5 // pred_check_branch
      %116 = sbr.rel (%p113) target = $region12
    $region11: #{tpu_custom_call.1} parent=5 // pred_region
      %s117 = ssub.s32 %s9, 1
      // Predicated region
      $region13: #{tpu_custom_call.1} parent=11 // pred_check
        %p118 = pneg %p56
      $region14: #{tpu_custom_call.1} parent=11 // pred_check_branch
        %120 = sbr.rel (%p118) target = $region16
      $region15: #{tpu_custom_call.1} parent=11 // pred_region
        _
      $region16: #{tpu_custom_call.1} parent=11 // pred_fallthru
        _
      // Predicated region
      $region17: #{tpu_custom_call.1} parent=11 // pred_check
        %p121 = pneg %p77
      $region18: #{tpu_custom_call.1} parent=11 // pred_check_branch
        %123 = sbr.rel (%p121) target = $region20
      $region19: #{tpu_custom_call.1} parent=11 // pred_region
        _
      $region20: #{tpu_custom_call.1} parent=11 // pred_fallthru
        _
    $region12: #{tpu_custom_call.1} parent=5 // pred_fallthru
      _
    %p124 = scmp.lt.s32.totalorder %s9, 2
    // Predicated region
    $region21: #{tpu_custom_call.1} parent=5 // pred_check
      %p125 = pneg %p124
    $region22: #{tpu_custom_call.1} parent=5 // pred_check_branch
      %127 = sbr.rel (%p125) target = $region24
    $region23: #{tpu_custom_call.1} parent=5 // pred_region
      // Predicated region
      $region25: #{tpu_custom_call.1} parent=23 // pred_check
        %p128 = pneg %p29
      $region26: #{tpu_custom_call.1} parent=23 // pred_check_branch
        %130 = sbr.rel (%p128) target = $region28
      $region27: #{tpu_custom_call.1} parent=23 // pred_region
        %p131 = scmp.lt.s32.totalorder %s9, 1
        %s132 = scalar_select %p131, %s9, 1
        %s133 = smul.addr %s132, 2
        %s134 = smul.addr %s133, 8
        %s135 = scalar_lea.vmem %s0, %s134
      $region28: #{tpu_custom_call.1} parent=23 // pred_fallthru
        _
    $region24: #{tpu_custom_call.1} parent=5 // pred_fallthru
      _
    %p136 = scmp.le.s32.totalorder 1, %s9
    %p137 = scmp.lt.s32.totalorder %s9, 3
    %p138 = pnand %p136, %p137
    %p139 = pneg %p138
    // Predicated region
    $region29: #{tpu_custom_call.1} parent=5 // pred_check
      _
    $region30: #{tpu_custom_call.1} parent=5 // pred_check_branch
      %141 = sbr.rel (%p138) target = $region32
    $region31: #{tpu_custom_call.1} parent=5 // pred_region
      %s142 = ssub.s32 %s9, 1
      %p143 = scmp.lt.s32.totalorder %s14, 1
      %s144 = scalar_select %p143, %s14, 1
      %s145 = smul.addr %s144, 2
      %s146 = smul.addr %s145, 8
      %s147 = scalar_lea.vmem %s0, %s146
      %p148 = pneg %p35
      %p149 = pneg %p32
      %p150 = pneg %p56
      %p151 = pneg %p53
      %p152 = pneg %p77
      %p153 = pneg %p74
      %p154 = pneg %p103
      %p155 = pneg %p100
      %p156 = scmp.lt.s32.totalorder %s14, 1
      %s157 = scalar_select %p156, %s14, 1
      %s158 = smul.addr %s157, 2
      %s159 = smul.addr %s158, 8
      %s160 = scalar_lea.vmem %s3, %s159
      %p161 = scmp.lt.s32.totalorder %s14, 1
      %s162 = scalar_select %p161, %s14, 1
      %s163 = smul.addr %s162, 2
      %s164 = smul.addr %s163, 8
      %s165 = scalar_lea.vmem %s0, %s164
      %p166 = scmp.lt.s32.totalorder %s14, 1
      %s167 = scalar_select %p166, %s14, 1
      %s168 = smul.addr %s167, 2
      %s169 = smul.addr %s168, 8
      %s170 = scalar_lea.vmem %s3, %s169
      %v171 = vld [vmem:[%s165] sm:$0xff]
      %v172 = vld [vmem:[%s165 + $0x8] sm:$0xff]
      %v173 = vrot.slane %v171, 6
      %v174 = vrot.slane %v172, 6
      %v175 = vlaneseq
      %v176 = vshrl.u32 %v175, 7
      %vm177 = vcmp.lt.s32.totalorder %v176, 2
      %v178 = vsel %vm177, %v173, %v174
      %v179 = vsel %vm177, %v174, %v173
      %v180 = vld [vmem:[%s1] sm:$0xf]
      %v181 = vrot.slane %v171, 7
      %v182 = vrot.slane %v172, 7
      %vm183 = vcmp.lt.s32.totalorder %v176, 1
      %v184 = vsel %vm183, %v181, %v182
      %v185 = vsel %vm183, %v182, %v181
      %s186 = scalar_lea.vmem %s1, 4
      %v187 = vld [vmem:[%s186] sm:$0xf]
      %vm188 = vcmask 31744
      %v190 = vsel %vm188, %v185, 0
      %v193 = vsel %vm188, %v184, 0
      %vm195 = vcmask 1043456
      %v197 = vsel %vm195, %v187, 0
      %199 = vmatprep.subr.mxu0 0.0
      %200 = vmatpush1.msra.mxu0 %v197
      %201 = vmatprep.subr.mxu0 0.0
      %202 = vmatpush1.msra.mxu0 0.0
      %203 = vmatprep.subr.mxu0 0.0
      %204 = vmatpush1.msra.mxu0 0.0
      %205 = vmatprep.subr.mxu0 0.0
      %206 = vmatpush1.msra.mxu0 0.0
      %207 = vmatprep.subr.mxu0 0.0
      %208 = vmatpush1.msra.mxu0 0.0
      %209 = vmatprep.subr.mxu0 0.0
      %210 = vmatpush1.msra.mxu0 0.0
      %211 = vmatprep.subr.mxu0 0.0
      %212 = vmatpush1.msra.mxu0 0.0
      %213 = vmatprep.subr.mxu0 0.0
      %214 = vmatpush1.msra.mxu0 0.0
      %215 = vmatprep.subr.mxu0 0.0
      %216 = vmatpush1.msra.mxu0 0.0
      %217 = vmatprep.subr.mxu0 0.0
      %218 = vmatpush1.msra.mxu0 0.0
      %219 = vmatprep.subr.mxu0 0.0
      %220 = vmatpush1.msra.mxu0 0.0
      %221 = vmatprep.subr.mxu0 0.0
      %222 = vmatpush1.msra.mxu0 0.0
      %223 = vmatprep.subr.mxu0 0.0
      %224 = vmatpush1.msra.mxu0 0.0
      %225 = vmatprep.subr.mxu0 0.0
      %226 = vmatpush1.msra.mxu0 0.0
      %227 = vmatprep.subr.mxu0 0.0
      %228 = vmatpush1.msra.mxu0 0.0
      %229 = vmatprep.subr.mxu0 0.0
      %230 = vmatpush1.msra.mxu0 0.0
      %231 = vmatprep.subr.mxu0 0.0
      %232 = vmatpush1.msra.mxu0 0.0
      %233 = vmatprep.subr.mxu0 0.0
      %234 = vmatpush1.msra.mxu0 0.0
      %235 = vmatprep.subr.mxu0 0.0
      %236 = vmatpush1.msra.mxu0 0.0
      %237 = vmatprep.subr.mxu0 0.0
      %238 = vmatpush1.msra.mxu0 0.0
      %239 = vmatprep.subr.mxu0 0.0
      %240 = vmatpush1.msra.mxu0 0.0
      %241 = vmatprep.subr.mxu0 0.0
      %242 = vmatpush1.msra.mxu0 0.0
      %243 = vmatprep.subr.mxu0 0.0
      %244 = vmatpush1.msra.mxu0 0.0
      %245 = vmatprep.subr.mxu0 0.0
      %246 = vmatpush1.msra.mxu0 0.0
      %247 = vmatprep.subr.mxu0 0.0
      %248 = vmatpush1.msra.mxu0 0.0
      %249 = vmatprep.subr.mxu0 0.0
      %250 = vmatpush1.msra.mxu0 0.0
      %251 = vmatprep.subr.mxu0 0.0
      %252 = vmatpush1.msra.mxu0 0.0
      %253 = vmatprep.subr.mxu0 0.0
      %254 = vmatpush1.msra.mxu0 0.0
      %255 = vmatprep.subr.mxu0 0.0
      %256 = vmatpush1.msra.mxu0 0.0
      %257 = vmatprep.subr.mxu0 0.0
      %258 = vmatpush1.msra.mxu0 0.0
      %259 = vmatprep.subr.mxu0 0.0
      %260 = vmatpush1.msra.mxu0 0.0
      %261 = vmatprep.subr.mxu0 0.0
      %262 = vmatpush1.msra.mxu0 0.0
      %263 = vmatprep.mubr.f32.mxu0 0.0
      %264 = vmatmul.mubr.f32.gmra.mrb[0].mxu0 %v190
      %v265 = vpop.f32.mrb[0].mxu0
      %v266 = vadd.f32 0.0, %v265
      %v267 = vpop.f32.mrb[0].mxu0
      %268 = vmatprep.mubr.f32.mxu0 0.0
      %269 = vmatmul.mubr.f32.gmra.mrb[0].mxu0 %v193
      %v270 = vpop.f32.mrb[0].mxu0
      %v271 = vadd.f32 0.0, %v270
      %v272 = vpop.f32.mrb[0].mxu0
      %273 = vdwg.mxu0
      %v275 = vsel %vm188, %v179, 0
      %v278 = vsel %vm188, %v178, 0
      %v281 = vsel %vm195, %v180, 0
      %283 = vmatprep.subr.mxu0 0.0
      %284 = vmatpush1.msra.mxu0 %v281
      %285 = vmatprep.subr.mxu0 0.0
      %286 = vmatpush1.msra.mxu0 0.0
      %287 = vmatprep.subr.mxu0 0.0
      %288 = vmatpush1.msra.mxu0 0.0
      %289 = vmatprep.subr.mxu0 0.0
      %290 = vmatpush1.msra.mxu0 0.0
      %291 = vmatprep.subr.mxu0 0.0
      %292 = vmatpush1.msra.mxu0 0.0
      %293 = vmatprep.subr.mxu0 0.0
      %294 = vmatpush1.msra.mxu0 0.0
      %295 = vmatprep.subr.mxu0 0.0
      %296 = vmatpush1.msra.mxu0 0.0
      %297 = vmatprep.subr.mxu0 0.0
      %298 = vmatpush1.msra.mxu0 0.0
      %299 = vmatprep.subr.mxu0 0.0
      %300 = vmatpush1.msra.mxu0 0.0
      %301 = vmatprep.subr.mxu0 0.0
      %302 = vmatpush1.msra.mxu0 0.0
      %303 = vmatprep.subr.mxu0 0.0
      %304 = vmatpush1.msra.mxu0 0.0
      %305 = vmatprep.subr.mxu0 0.0
      %306 = vmatpush1.msra.mxu0 0.0
      %307 = vmatprep.subr.mxu0 0.0
      %308 = vmatpush1.msra.mxu0 0.0
      %309 = vmatprep.subr.mxu0 0.0
      %310 = vmatpush1.msra.mxu0 0.0
      %311 = vmatprep.subr.mxu0 0.0
      %312 = vmatpush1.msra.mxu0 0.0
      %313 = vmatprep.subr.mxu0 0.0
      %314 = vmatpush1.msra.mxu0 0.0
      %315 = vmatprep.subr.mxu0 0.0
      %316 = vmatpush1.msra.mxu0 0.0
      %317 = vmatprep.subr.mxu0 0.0
      %318 = vmatpush1.msra.mxu0 0.0
      %319 = vmatprep.subr.mxu0 0.0
      %320 = vmatpush1.msra.mxu0 0.0
      %321 = vmatprep.subr.mxu0 0.0
      %322 = vmatpush1.msra.mxu0 0.0
      %323 = vmatprep.subr.mxu0 0.0
      %324 = vmatpush1.msra.mxu0 0.0
      %325 = vmatprep.subr.mxu0 0.0
      %326 = vmatpush1.msra.mxu0 0.0
      %327 = vmatprep.subr.mxu0 0.0
      %328 = vmatpush1.msra.mxu0 0.0
      %329 = vmatprep.subr.mxu0 0.0
      %330 = vmatpush1.msra.mxu0 0.0
      %331 = vmatprep.subr.mxu0 0.0
      %332 = vmatpush1.msra.mxu0 0.0
      %333 = vmatprep.subr.mxu0 0.0
      %334 = vmatpush1.msra.mxu0 0.0
      %335 = vmatprep.subr.mxu0 0.0
      %336 = vmatpush1.msra.mxu0 0.0
      %337 = vmatprep.subr.mxu0 0.0
      %338 = vmatpush1.msra.mxu0 0.0
      %339 = vmatprep.subr.mxu0 0.0
      %340 = vmatpush1.msra.mxu0 0.0
      %341 = vmatprep.subr.mxu0 0.0
      %342 = vmatpush1.msra.mxu0 0.0
      %343 = vmatprep.subr.mxu0 0.0
      %344 = vmatpush1.msra.mxu0 0.0
      %345 = vmatprep.subr.mxu0 0.0
      %346 = vmatpush1.msra.mxu0 0.0
      %347 = vmatprep.mubr.f32.mxu0 0.0
      %348 = vmatmul.mubr.f32.gmra.mrb[0].mxu0 %v275
      %v349 = vpop.f32.mrb[0].mxu0
      %v350 = vadd.f32 %v266, %v349
      %v351 = vpop.f32.mrb[0].mxu0
      %352 = vmatprep.mubr.f32.mxu0 0.0
      %353 = vmatmul.mubr.f32.gmra.mrb[0].mxu0 %v278
      %v354 = vpop.f32.mrb[0].mxu0
      %v355 = vadd.f32 %v271, %v354
      %v356 = vpop.f32.mrb[0].mxu0
      %357 = vdwg.mxu0
      %s358 = scalar_lea.vmem %s1, 8
      %v359 = vld [vmem:[%s358] sm:$0xf]
      %v361 = vsel %vm188, %v171, 0
      %v364 = vsel %vm188, %v172, 0
      %v367 = vsel %vm195, %v359, 0
      %369 = vmatprep.subr.mxu0 0.0
      %370 = vmatpush1.msra.mxu0 %v367
      %371 = vmatprep.subr.mxu0 0.0
      %372 = vmatpush1.msra.mxu0 0.0
      %373 = vmatprep.subr.mxu0 0.0
      %374 = vmatpush1.msra.mxu0 0.0
      %375 = vmatprep.subr.mxu0 0.0
      %376 = vmatpush1.msra.mxu0 0.0
      %377 = vmatprep.subr.mxu0 0.0
      %378 = vmatpush1.msra.mxu0 0.0
      %379 = vmatprep.subr.mxu0 0.0
      %380 = vmatpush1.msra.mxu0 0.0
      %381 = vmatprep.subr.mxu0 0.0
      %382 = vmatpush1.msra.mxu0 0.0
      %383 = vmatprep.subr.mxu0 0.0
      %384 = vmatpush1.msra.mxu0 0.0
      %385 = vmatprep.subr.mxu0 0.0
      %386 = vmatpush1.msra.mxu0 0.0
      %387 = vmatprep.subr.mxu0 0.0
      %388 = vmatpush1.msra.mxu0 0.0
      %389 = vmatprep.subr.mxu0 0.0
      %390 = vmatpush1.msra.mxu0 0.0
      %391 = vmatprep.subr.mxu0 0.0
      %392 = vmatpush1.msra.mxu0 0.0
      %393 = vmatprep.subr.mxu0 0.0
      %394 = vmatpush1.msra.mxu0 0.0
      %395 = vmatprep.subr.mxu0 0.0
      %396 = vmatpush1.msra.mxu0 0.0
      %397 = vmatprep.subr.mxu0 0.0
      %398 = vmatpush1.msra.mxu0 0.0
      %399 = vmatprep.subr.mxu0 0.0
      %400 = vmatpush1.msra.mxu0 0.0
      %401 = vmatprep.subr.mxu0 0.0
      %402 = vmatpush1.msra.mxu0 0.0
      %403 = vmatprep.subr.mxu0 0.0
      %404 = vmatpush1.msra.mxu0 0.0
      %405 = vmatprep.subr.mxu0 0.0
      %406 = vmatpush1.msra.mxu0 0.0
      %407 = vmatprep.subr.mxu0 0.0
      %408 = vmatpush1.msra.mxu0 0.0
      %409 = vmatprep.subr.mxu0 0.0
      %410 = vmatpush1.msra.mxu0 0.0
      %411 = vmatprep.subr.mxu0 0.0
      %412 = vmatpush1.msra.mxu0 0.0
      %413 = vmatprep.subr.mxu0 0.0
      %414 = vmatpush1.msra.mxu0 0.0
      %415 = vmatprep.subr.mxu0 0.0
      %416 = vmatpush1.msra.mxu0 0.0
      %417 = vmatprep.subr.mxu0 0.0
      %418 = vmatpush1.msra.mxu0 0.0
      %419 = vmatprep.subr.mxu0 0.0
      %420 = vmatpush1.msra.mxu0 0.0
      %421 = vmatprep.subr.mxu0 0.0
      %422 = vmatpush1.msra.mxu0 0.0
      %423 = vmatprep.subr.mxu0 0.0
      %424 = vmatpush1.msra.mxu0 0.0
      %425 = vmatprep.subr.mxu0 0.0
      %426 = vmatpush1.msra.mxu0 0.0
      %427 = vmatprep.subr.mxu0 0.0
      %428 = vmatpush1.msra.mxu0 0.0
      %429 = vmatprep.subr.mxu0 0.0
      %430 = vmatpush1.msra.mxu0 0.0
      %431 = vmatprep.subr.mxu0 0.0
      %432 = vmatpush1.msra.mxu0 0.0
      %433 = vmatprep.mubr.f32.mxu0 0.0
      %434 = vmatmul.mubr.f32.gmra.mrb[0].mxu0 %v361
      %v435 = vpop.f32.mrb[0].mxu0
      %v436 = vadd.f32 0.0, %v435
      %v437 = vpop.f32.mrb[0].mxu0
      %438 = vmatprep.mubr.f32.mxu0 0.0
      %439 = vmatmul.mubr.f32.gmra.mrb[0].mxu0 %v364
      %v440 = vpop.f32.mrb[0].mxu0
      %v441 = vadd.f32 0.0, %v440
      %v442 = vpop.f32.mrb[0].mxu0
      %443 = vdwg.mxu0
      %v444 = vadd.f32 %v350, %v436
      %v445 = vadd.f32 %v355, %v441
      %v446 = vld [vmem:[%s2] sm:$0x1]
      %v448 = vlaneseq
      %v449 = vshrl.u32 %v448, 7
      %v450 = vsub.s32 0, %v449
      %v451 = vrot.slane %v446, %v450
      %v453 = vadd.f32 %v444, %v451
      %v454 = vadd.f32 %v445, %v451
      %v455 = vadd.s32 %v176, 8
      %vm456 = vcmp.lt.s32.totalorder %v455, 2
      %v457 = vsel %vm177, %v171, %v453
      %v458 = vsel %vm456, %v172, %v454
      %459 = vst.msk [vmem:[%s170] sm:$0xff] %vm188, %v457
      %460 = vst.msk [vmem:[%s170 + $0x8] sm:$0xff] %vm188, %v458
      %p461 = scmp.lt.s32.totalorder %s14, 1
      %s462 = scalar_select %p461, %s14, 1
      %s463 = smul.addr %s462, 2
      %s464 = smul.addr %s463, 8
      %s465 = scalar_lea.vmem %s3, %s464
      // Predicated region
      $region33: #{tpu_custom_call.1} parent=31 // pred_check
        %p466 = pneg %p100
      $region34: #{tpu_custom_call.1} parent=31 // pred_check_branch
        %468 = sbr.rel (%p466) target = $region36
      $region35: #{tpu_custom_call.1} parent=31 // pred_region
        _
      $region36: #{tpu_custom_call.1} parent=31 // pred_fallthru
        _
    $region32: #{tpu_custom_call.1} parent=5 // pred_fallthru
      _
    %p469 = scmp.le.s32.totalorder 2, %s9
    // Predicated region
    $region37: #{tpu_custom_call.1} parent=5 // pred_check
      %p470 = pneg %p469
    $region38: #{tpu_custom_call.1} parent=5 // pred_check_branch
      %472 = sbr.rel (%p470) target = $region40
    $region39: #{tpu_custom_call.1} parent=5 // pred_region
      %s473 = ssub.s32 %s9, 2
      // Predicated region
      $region41: #{tpu_custom_call.1} parent=39 // pred_check
        %p474 = pneg %p106
      $region42: #{tpu_custom_call.1} parent=39 // pred_check_branch
        %476 = sbr.rel (%p474) target = $region44
      $region43: #{tpu_custom_call.1} parent=39 // pred_region
        %p477 = scmp.lt.s32.totalorder %s15, 1
        %s478 = scalar_select %p477, %s15, 1
        %s479 = smul.addr %s478, 2
        %s480 = smul.addr %s479, 8
        %s481 = scalar_lea.vmem %s3, %s480
      $region44: #{tpu_custom_call.1} parent=39 // pred_fallthru
        _
    $region40: #{tpu_custom_call.1} parent=5 // pred_fallthru
      _
  $region6: #{tpu_custom_call.1} parent=0 // loop_footer
    %s13 = sadd.s32 1, %s9
  $region7: #{tpu_custom_call.1} parent=0 // loop_footer_branch
    %8 = sbr.rel target = $region3
  $region8: #{tpu_custom_call.1} parent=0 // loop_exit
    _

</llo_original>
